<compile_context>
chip_gen: v7x
topology: tpu7x:2x2x1
jax: 0.10.0
libtpu: 0.0.40
codegen_flags: <defaults>
</compile_context>

<pallas_src>
import functools

import jax
import jax.numpy as jnp
from jax.experimental import pallas as pl
from jax.experimental.pallas import tpu as pltpu


def mgcn_split_kernel(x_ref, wcat_ref, mt_ref, dmt_ref, ablk_ref, wlt_ref,
                      b_ref, o_ref, *, cout):
    tb, j, cin = x_ref.shape
    xflat = x_ref[...].reshape(tb * j, cin)                     # (TB*J, Cin)

    # Fused projection: [h0 | h1] in one 2*Cout-wide (128-lane) MXU matmul.
    h = jnp.dot(xflat, wcat_ref[...], preferred_element_type=jnp.float32)
    h0 = h[:, :cout]                                            # (TB*J, C)
    h1 = h[:, cout:]                                            # (TB*J, C)

    # Off-diagonal graph conv: block-diag adjacency over the TB batch rows.
    h1m = mt_ref[...] * h1                                      # M * h1 (VPU)
    off = jnp.dot(ablk_ref[...], h1m,
                  preferred_element_type=jnp.float32)           # (TB*J, C)

    # Diagonal part is a pure row/column scale (diag(A)*M folded on host).
    pre = dmt_ref[...] * h0 + off

    # Final Linear; line bias + module bias folded into b_ref.
    out = jnp.dot(pre, wlt_ref[...],
                  preferred_element_type=jnp.float32) + b_ref[...]
    o_ref[...] = out.reshape(tb, j, cout)


def mgcn_split_forward(x, w0, w1, m, adj, adj2, wl, bl, bias, *, k, tb=8):
    """Forward pass of ModulatedGraphConv_split.

    adj, adj2 are the single (J, J) matrices exactly as held by the module
    (adj is repeated over k heads inside the module, adj2 is shared), so the
    effective adjacency is head-invariant by construction.
    """
    b, j, cin = x.shape
    c = w0.shape[1]
    assert c % k == 0
    f32 = jnp.float32

    adj_eff = (adj + adj2).astype(f32)                    # (J, J), all heads
    diag = jnp.diagonal(adj_eff)                          # (J,)
    adj_off = adj_eff - jnp.diag(diag)                    # zero diagonal

    wcat = jnp.concatenate([w0, w1], axis=1).astype(f32)  # (Cin, 2C)
    m_f32 = m.astype(f32)
    m_tile = jnp.tile(m_f32, (tb, 1))                     # (TB*J, C)
    dm_tile = jnp.tile(diag[:, None] * m_f32, (tb, 1))    # diag(A)*M, tiled
    a_blk = jnp.kron(jnp.eye(tb, dtype=f32), adj_off)     # (TB*J, TB*J)
    wlt = wl.T.astype(f32)                                # Linear does x @ W.T
    total_bias = (bl + bias).astype(f32).reshape(1, c)

    # Pad the batch to a multiple of the batch tile.
    b_pad = ((b + tb - 1) // tb) * tb
    xp = x.astype(f32)
    if b_pad != b:
        xp = jnp.pad(xp, ((0, b_pad - b), (0, 0), (0, 0)))

    kernel = functools.partial(mgcn_split_kernel, cout=c)
    out = pl.pallas_call(
        kernel,
        out_shape=jax.ShapeDtypeStruct((b_pad, j, c), f32),
        grid_spec=pltpu.PrefetchScalarGridSpec(
            num_scalar_prefetch=0,
            grid=(b_pad // tb,),
            in_specs=[
                pl.BlockSpec((tb, j, cin), lambda i: (i, 0, 0)),   # x tile
                pl.BlockSpec((cin, 2 * c), lambda i: (0, 0)),      # [W0|W1]
                pl.BlockSpec((tb * j, c), lambda i: (0, 0)),       # M (tiled)
                pl.BlockSpec((tb * j, c), lambda i: (0, 0)),       # diag(A)*M
                pl.BlockSpec((tb * j, tb * j), lambda i: (0, 0)),  # blockdiag A_off
                pl.BlockSpec((c, c), lambda i: (0, 0)),            # line.weight.T
                pl.BlockSpec((1, c), lambda i: (0, 0)),            # folded bias
            ],
            out_specs=pl.BlockSpec((tb, j, c), lambda i: (i, 0, 0)),
        ),
        compiler_params=pltpu.CompilerParams(
            dimension_semantics=("parallel",)),
    )(xp, wcat, m_tile, dm_tile, a_blk, wlt, total_bias)
    return out[:b]


def mgcn_split_ref(x, w0, w1, m, adj_k, adj2, wl, bl, bias, *, k):
    """Pure-JAX reference mirroring the PyTorch forward (full per-head path)."""
    b, j, cin = x.shape
    c = w0.shape[1]
    h0 = x @ w0
    h1 = x @ w1
    h0m = (m * h0).reshape(b, j, k, c // k).transpose(0, 2, 1, 3)
    h1m = (m * h1).reshape(b, j, k, c // k).transpose(0, 2, 1, 3)
    adj = adj_k + adj2[None]
    E = jnp.eye(j, dtype=jnp.float32)
    out = (jnp.einsum('kij,bkjc->bkic', adj * E, h0m)
           + jnp.einsum('kij,bkjc->bkic', adj * (1.0 - E), h1m))
    out = out.transpose(0, 2, 1, 3).reshape(b, j, c)
    out = out @ wl.T + bl
    return out + bias.reshape(1, 1, -1)


if __name__ == "__main__":
    # Small, module-consistent shapes (TB=8 -> TB*J = 128 rows per grid step,
    # grid = 2 so both TensorCores get work on v7x).
    B, J, CIN, COUT, K, TB = 16, 16, 32, 64, 4, 8

    key = jax.random.PRNGKey(0)
    k_x, k_w, k_m, k_adj, k_wl, k_bl, k_b = jax.random.split(key, 7)

    x = jax.random.normal(k_x, (B, J, CIN), dtype=jnp.float32)

    # Deterministic, xavier-flavored parameter init (synthetic, not a checkpoint).
    lim_w = 1.414 * (6.0 / (CIN + COUT)) ** 0.5
    W = jax.random.uniform(k_w, (2, CIN, COUT), minval=-lim_w, maxval=lim_w,
                           dtype=jnp.float32)
    lim_m = 1.414 * (6.0 / (J + COUT)) ** 0.5
    M = jax.random.uniform(k_m, (J, COUT), minval=-lim_m, maxval=lim_m,
                           dtype=jnp.float32)
    adj = jax.random.uniform(k_adj, (J, J), dtype=jnp.float32)       # user adjacency
    adj2 = jnp.full((J, J), 1e-6, dtype=jnp.float32)                 # nn.init.constant_
    lim_l = (1.0 / COUT) ** 0.5
    Wl = jax.random.uniform(k_wl, (COUT, COUT), minval=-lim_l, maxval=lim_l,
                            dtype=jnp.float32)                       # line.weight
    bl = jax.random.uniform(k_bl, (COUT,), minval=-lim_l, maxval=lim_l,
                            dtype=jnp.float32)                       # line.bias
    stdv = 1.0 / (COUT ** 0.5)
    bias = jax.random.uniform(k_b, (COUT,), minval=-stdv, maxval=stdv,
                              dtype=jnp.float32)                     # module bias

    out = mgcn_split_forward(x, W[0], W[1], M, adj, adj2, Wl, bl, bias,
                             k=K, tb=TB)
    out = jax.block_until_ready(out)

    adj_k = jnp.broadcast_to(adj[None], (K, J, J))                   # .repeat(k,1,1)
    ref = mgcn_split_ref(x, W[0], W[1], M, adj_k, adj2, Wl, bl, bias, k=K)
    assert out.shape == (B, J, COUT)
    assert jnp.allclose(out, ref, atol=1e-4, rtol=1e-4), "mismatch vs reference"

    print("KERNEL_OK")
</pallas_src>

<mosaic_0001>
module attributes {stable_mosaic.version = 11 : i64} {
  func.func @mgcn_split_kernel(%arg0: i32, %arg1: memref<8x16x32xf32, #tpu.memory_space<vmem>>, %arg2: memref<32x128xf32, #tpu.memory_space<vmem>>, %arg3: memref<128x64xf32, #tpu.memory_space<vmem>>, %arg4: memref<128x64xf32, #tpu.memory_space<vmem>>, %arg5: memref<128x128xf32, #tpu.memory_space<vmem>>, %arg6: memref<64x64xf32, #tpu.memory_space<vmem>>, %arg7: memref<1x64xf32, #tpu.memory_space<vmem>>, %arg8: memref<8x16x64xf32, #tpu.memory_space<vmem>>) attributes {dimension_semantics = [#tpu.dimension_semantics<parallel>], iteration_bounds = array<i64: 2>, scalar_prefetch = 0 : i64, scratch_operands = 0 : i64, tpu.core_type = #tpu.core_type<tc>, window_params = [{transform_indices = @transform_0, window_bounds = array<i64: 8, 16, 32>}, {pipeline_mode = #tpu.pipeline_mode<synchronous>, transform_indices = @transform_1, window_bounds = array<i64: 32, 128>}, {pipeline_mode = #tpu.pipeline_mode<synchronous>, transform_indices = @transform_2, window_bounds = array<i64: 128, 64>}, {pipeline_mode = #tpu.pipeline_mode<synchronous>, transform_indices = @transform_3, window_bounds = array<i64: 128, 64>}, {pipeline_mode = #tpu.pipeline_mode<synchronous>, transform_indices = @transform_4, window_bounds = array<i64: 128, 128>}, {pipeline_mode = #tpu.pipeline_mode<synchronous>, transform_indices = @transform_5, window_bounds = array<i64: 64, 64>}, {pipeline_mode = #tpu.pipeline_mode<synchronous>, transform_indices = @transform_6, window_bounds = array<i64: 1, 64>}, {transform_indices = @transform_7, window_bounds = array<i64: 8, 16, 64>}]} {
    %c0 = arith.constant 0 : index
    %c0_0 = arith.constant 0 : index
    %c0_1 = arith.constant 0 : index
    %0 = vector.load %arg1[%c0, %c0_0, %c0_1] : memref<8x16x32xf32, #tpu.memory_space<vmem>>, vector<8x16x32xf32>
    %1 = vector.shape_cast %0 : vector<8x16x32xf32> to vector<128x32xf32>
    %c0_2 = arith.constant 0 : index
    %c0_3 = arith.constant 0 : index
    %2 = vector.load %arg2[%c0_2, %c0_3] : memref<32x128xf32, #tpu.memory_space<vmem>>, vector<32x128xf32>
    %cst = arith.constant dense<0.000000e+00> : vector<128x128xf32>
    %3 = tpu.matmul %1, %2, %cst {dimension_numbers = #tpu.dot_dimension_numbers<[1], [0], [0], [1], [0, 0, 1, 1], [], []>} : vector<128x32xf32>, vector<32x128xf32>, vector<128x128xf32> -> vector<128x128xf32>
    %4 = vector.extract_strided_slice %3 {offsets = [0, 0], sizes = [128, 64], strides = [1, 1]} : vector<128x128xf32> to vector<128x64xf32>
    %5 = vector.extract_strided_slice %3 {offsets = [0, 64], sizes = [128, 64], strides = [1, 1]} : vector<128x128xf32> to vector<128x64xf32>
    %c0_4 = arith.constant 0 : index
    %c0_5 = arith.constant 0 : index
    %6 = vector.load %arg3[%c0_4, %c0_5] : memref<128x64xf32, #tpu.memory_space<vmem>>, vector<128x64xf32>
    %7 = arith.mulf %6, %5 : vector<128x64xf32>
    %c0_6 = arith.constant 0 : index
    %c0_7 = arith.constant 0 : index
    %8 = vector.load %arg5[%c0_6, %c0_7] : memref<128x128xf32, #tpu.memory_space<vmem>>, vector<128x128xf32>
    %cst_8 = arith.constant dense<0.000000e+00> : vector<128x64xf32>
    %9 = tpu.matmul %8, %7, %cst_8 {dimension_numbers = #tpu.dot_dimension_numbers<[1], [0], [0], [1], [0, 0, 1, 1], [], []>} : vector<128x128xf32>, vector<128x64xf32>, vector<128x64xf32> -> vector<128x64xf32>
    %c0_9 = arith.constant 0 : index
    %c0_10 = arith.constant 0 : index
    %10 = vector.load %arg4[%c0_9, %c0_10] : memref<128x64xf32, #tpu.memory_space<vmem>>, vector<128x64xf32>
    %11 = arith.mulf %10, %4 : vector<128x64xf32>
    %12 = arith.addf %11, %9 : vector<128x64xf32>
    %c0_11 = arith.constant 0 : index
    %c0_12 = arith.constant 0 : index
    %13 = vector.load %arg6[%c0_11, %c0_12] : memref<64x64xf32, #tpu.memory_space<vmem>>, vector<64x64xf32>
    %cst_13 = arith.constant dense<0.000000e+00> : vector<128x64xf32>
    %14 = tpu.matmul %12, %13, %cst_13 {dimension_numbers = #tpu.dot_dimension_numbers<[1], [0], [0], [1], [0, 0, 1, 1], [], []>} : vector<128x64xf32>, vector<64x64xf32>, vector<128x64xf32> -> vector<128x64xf32>
    %c0_14 = arith.constant 0 : index
    %c0_15 = arith.constant 0 : index
    %15 = vector.load %arg7[%c0_14, %c0_15] : memref<1x64xf32, #tpu.memory_space<vmem>>, vector<1x64xf32>
    %16 = vector.broadcast %15 : vector<1x64xf32> to vector<128x64xf32>
    %17 = arith.addf %14, %16 : vector<128x64xf32>
    %18 = vector.shape_cast %17 : vector<128x64xf32> to vector<8x16x64xf32>
    %c0_16 = arith.constant 0 : index
    %c0_17 = arith.constant 0 : index
    %c0_18 = arith.constant 0 : index
    %19 = vector.load %arg8[%c0_16, %c0_17, %c0_18] : memref<8x16x64xf32, #tpu.memory_space<vmem>>, vector<8x16x64xf32>
    tpu.vector_store %arg8[%c0_16, %c0_17, %c0_18], %18 {strides = array<i32>} : memref<8x16x64xf32, #tpu.memory_space<vmem>>, vector<8x16x64xf32>,
    return
  }
  func.func @transform_0(%arg0: i32) -> (i32, i32, i32) {
    %c0_i32 = arith.constant 0 : i32
    %c0_i32_0 = arith.constant 0 : i32
    %c0_i32_1 = arith.constant 0 : i32
    return %arg0, %c0_i32, %c0_i32_0 : i32, i32, i32
  }
  func.func @transform_1(%arg0: i32) -> (i32, i32) {
    %c0_i32 = arith.constant 0 : i32
    %c0_i32_0 = arith.constant 0 : i32
    %c0_i32_1 = arith.constant 0 : i32
    return %c0_i32, %c0_i32_0 : i32, i32
  }
  func.func @transform_2(%arg0: i32) -> (i32, i32) {
    %c0_i32 = arith.constant 0 : i32
    %c0_i32_0 = arith.constant 0 : i32
    %c0_i32_1 = arith.constant 0 : i32
    return %c0_i32, %c0_i32_0 : i32, i32
  }
  func.func @transform_3(%arg0: i32) -> (i32, i32) {
    %c0_i32 = arith.constant 0 : i32
    %c0_i32_0 = arith.constant 0 : i32
    %c0_i32_1 = arith.constant 0 : i32
    return %c0_i32, %c0_i32_0 : i32, i32
  }
  func.func @transform_4(%arg0: i32) -> (i32, i32) {
    %c0_i32 = arith.constant 0 : i32
    %c0_i32_0 = arith.constant 0 : i32
    %c0_i32_1 = arith.constant 0 : i32
    return %c0_i32, %c0_i32_0 : i32, i32
  }
  func.func @transform_5(%arg0: i32) -> (i32, i32) {
    %c0_i32 = arith.constant 0 : i32
    %c0_i32_0 = arith.constant 0 : i32
    %c0_i32_1 = arith.constant 0 : i32
    return %c0_i32, %c0_i32_0 : i32, i32
  }
  func.func @transform_6(%arg0: i32) -> (i32, i32) {
    %c0_i32 = arith.constant 0 : i32
    %c0_i32_0 = arith.constant 0 : i32
    %c0_i32_1 = arith.constant 0 : i32
    return %c0_i32, %c0_i32_0 : i32, i32
  }
  func.func @transform_7(%arg0: i32) -> (i32, i32, i32) {
    %c0_i32 = arith.constant 0 : i32
    %c0_i32_0 = arith.constant 0 : i32
    %c0_i32_1 = arith.constant 0 : i32
    return %arg0, %c0_i32, %c0_i32_0 : i32, i32, i32
  }
}

</mosaic_0001>

<llo_original>
// kernel: tpu_custom_call.1
$region0: #{tpu_custom_call.1}
  #allocation0 [shape = 'u32[]', space=smem, size = 0x4, offset = 0x4, fixed_abs, tag = 'smem constant byte address 0x4 - core index']
  #allocation1 [shape = 'u32[144,128]{1,0:T(1,128)}', space=vmem, size = 0x12000, scoped, tag = 'internal scratch']
  %s0 = inlined_call_operand.vmem [shape: f32[16,16,32], index: 0, kind: input, shape index: {}]
  %s1 = inlined_call_operand.hbm [shape: f32[32,128], index: 1, kind: input, shape index: {}]
  %s2 = inlined_call_operand.vmem [shape: f32[128,64], index: 2, kind: input, shape index: {}]
  %s3 = inlined_call_operand.vmem [shape: f32[128,64], index: 3, kind: input, shape index: {}]
  %s4 = inlined_call_operand.vmem [shape: f32[128,128], index: 4, kind: input, shape index: {}]
  %s5 = inlined_call_operand.hbm [shape: f32[64,64], index: 5, kind: input, shape index: {}]
  %s6 = inlined_call_operand.vmem [shape: f32[1,64], index: 6, kind: input, shape index: {}]
  %s7 = inlined_call_operand.hbm [shape: f32[16,16,64], index: 7, kind: output, shape index: {}]
  %s8 = sld [smem:[#allocation0]]
  $region69: #{tpu_custom_call.1} parent=0
    _
  %s10 = ssub.s32 1, %s8
  %s11 = scalar_select 0, %s10, %s8
  $region1: #{tpu_custom_call.1} parent=0
    #allocation2 [shape = 'u8[16384]{0}', space=vmem, size = 0x4000, scoped, tag = 'input window, operand 1, single buffered']
    #allocation3 [shape = 's32[2]{0}', space=sflag, size = 0x8, scoped, tag = 'scoped memory for tpu_custom_call.1']
    #allocation4 [shape = 's32[2]{0}', space=sflag, size = 0x8, scoped, tag = 'scoped memory for tpu_custom_call.1']
    #allocation5 [shape = 'u8[32768]{0}', space=vmem, size = 0x8000, scoped, tag = 'input window, operand 5, single buffered']
    #allocation6 [shape = 's32[1]{0}', space=sflag, size = 0x4, scoped, tag = 'scoped memory for tpu_custom_call.1']
    #allocation7 [shape = 'u8[131072]{0}', space=vmem, size = 0x20000, scoped, tag = 'output window, operand 0']
    %12 = vsyncpa [#allocation3], 0
    %13 = vsyncpa [#allocation6], 0
    %14 = vsyncpa [#allocation4], 0
    %s15 = scalar_lea.sflag [#allocation4], 1
    %16 = vsyncpa %s15, 0
    loop: start=0, step=1, limit=4
    $region2: #{tpu_custom_call.1} parent=1 // loop_pre_header
      _
    $region3: #{tpu_custom_call.1} parent=1 // loop_header
      %s18 = sphi 0, %s22
      %p19 = scmp.ge.s32.totalorder %s18, 4
      %s28 = sphi 0, %s30
      %s31 = sphi 0, %s28
      %s32 = sphi 0, %s31
      %s48 = sphi 0, %s32
      %s52 = sphi 0, %s52
      %s54 = sphi 0, %s52
      %s55 = sphi 0, %s54
      %s69 = sphi 0, %s55
      %s73 = sphi 0, %s73
      %s75 = sphi 0, %s73
      %s76 = sphi 0, %s75
      %s90 = sphi 0, %s76
      %s94 = sphi 0, %s94
      %s96 = sphi 0, %s94
      %s97 = sphi 0, %s96
      %s111 = sphi 0, %s97
      %s115 = sphi 0, %s115
      %s117 = sphi 0, %s115
      %s118 = sphi 0, %s117
      %s132 = sphi 0, %s118
      %s136 = sphi 0, %s136
      %s138 = sphi 0, %s136
      %s139 = sphi 0, %s138
      %s153 = sphi 0, %s139
      %s157 = sphi 0, %s157
      %s159 = sphi 0, %s157
      %s160 = sphi 0, %s159
      %s174 = sphi 0, %s160
      %s180 = sphi 0, %s182
      %s183 = sphi 0, %s180
      %s184 = sphi 0, %s183
      %s200 = sphi 0, %s184
    $region4: #{tpu_custom_call.1} parent=1 // loop_header_branch
      %21 = sbr.rel (%p19) target = $region8
    $region5: #{tpu_custom_call.1} parent=1 // loop_body
      %s23 = ssub.s32 %s18, 1
      %s24 = ssub.s32 %s18, 2
      %s25 = sadd.s32 %s18, 1
      %s26 = ssub.s32 %s18, %s25
      %p27 = scmp.eq.s32.totalorder %s26, 0
      %s29 = sadd.s32 %s28, 1
      %s30 = scalar_select %p27, %s28, %s29
      %p33 = pneg %p27
      %p34 = scmp.eq.s32.totalorder %s18, 1
      %p35 = por %p33, %p34
      %p36 = scmp.ne.s32.totalorder %s28, %s31
      %p37 = scmp.eq.s32.totalorder %s18, 0
      %p38 = por %p36, %p37
      %p39 = scmp.ne.s32.totalorder %s28, %s31
      %p40 = scmp.eq.s32.totalorder %s23, 1
      %p41 = por %p39, %p40
      %p42 = scmp.ne.s32.totalorder %s31, %s32
      %p43 = scmp.eq.s32.totalorder %s23, 0
      %p44 = por %p42, %p43
      %p45 = scmp.ne.s32.totalorder %s31, %s32
      %p46 = scmp.eq.s32.totalorder %s24, 1
      %p47 = por %p45, %p46
      %p49 = scmp.ne.s32.totalorder %s32, %s48
      %p50 = scmp.eq.s32.totalorder %s24, 0
      %p51 = por %p49, %p50
      %s53 = sadd.s32 %s52, 1
      %p56 = scmp.eq.s32.totalorder %s18, 1
      %p57 = scmp.ne.s32.totalorder %s52, %s54
      %p58 = scmp.eq.s32.totalorder %s18, 0
      %p59 = por %p57, %p58
      %p60 = scmp.ne.s32.totalorder %s52, %s54
      %p61 = scmp.eq.s32.totalorder %s23, 1
      %p62 = por %p60, %p61
      %p63 = scmp.ne.s32.totalorder %s54, %s55
      %p64 = scmp.eq.s32.totalorder %s23, 0
      %p65 = por %p63, %p64
      %p66 = scmp.ne.s32.totalorder %s54, %s55
      %p67 = scmp.eq.s32.totalorder %s24, 1
      %p68 = por %p66, %p67
      %p70 = scmp.ne.s32.totalorder %s55, %s69
      %p71 = scmp.eq.s32.totalorder %s24, 0
      %p72 = por %p70, %p71
      %s74 = sadd.s32 %s73, 1
      %p77 = scmp.eq.s32.totalorder %s18, 1
      %p78 = scmp.ne.s32.totalorder %s73, %s75
      %p79 = scmp.eq.s32.totalorder %s18, 0
      %p80 = por %p78, %p79
      %p81 = scmp.ne.s32.totalorder %s73, %s75
      %p82 = scmp.eq.s32.totalorder %s23, 1
      %p83 = por %p81, %p82
      %p84 = scmp.ne.s32.totalorder %s75, %s76
      %p85 = scmp.eq.s32.totalorder %s23, 0
      %p86 = por %p84, %p85
      %p87 = scmp.ne.s32.totalorder %s75, %s76
      %p88 = scmp.eq.s32.totalorder %s24, 1
      %p89 = por %p87, %p88
      %p91 = scmp.ne.s32.totalorder %s76, %s90
      %p92 = scmp.eq.s32.totalorder %s24, 0
      %p93 = por %p91, %p92
      %s95 = sadd.s32 %s94, 1
      %p98 = scmp.eq.s32.totalorder %s18, 1
      %p99 = scmp.ne.s32.totalorder %s94, %s96
      %p100 = scmp.eq.s32.totalorder %s18, 0
      %p101 = por %p99, %p100
      %p102 = scmp.ne.s32.totalorder %s94, %s96
      %p103 = scmp.eq.s32.totalorder %s23, 1
      %p104 = por %p102, %p103
      %p105 = scmp.ne.s32.totalorder %s96, %s97
      %p106 = scmp.eq.s32.totalorder %s23, 0
      %p107 = por %p105, %p106
      %p108 = scmp.ne.s32.totalorder %s96, %s97
      %p109 = scmp.eq.s32.totalorder %s24, 1
      %p110 = por %p108, %p109
      %p112 = scmp.ne.s32.totalorder %s97, %s111
      %p113 = scmp.eq.s32.totalorder %s24, 0
      %p114 = por %p112, %p113
      %s116 = sadd.s32 %s115, 1
      %p119 = scmp.eq.s32.totalorder %s18, 1
      %p120 = scmp.ne.s32.totalorder %s115, %s117
      %p121 = scmp.eq.s32.totalorder %s18, 0
      %p122 = por %p120, %p121
      %p123 = scmp.ne.s32.totalorder %s115, %s117
      %p124 = scmp.eq.s32.totalorder %s23, 1
      %p125 = por %p123, %p124
      %p126 = scmp.ne.s32.totalorder %s117, %s118
      %p127 = scmp.eq.s32.totalorder %s23, 0
      %p128 = por %p126, %p127
      %p129 = scmp.ne.s32.totalorder %s117, %s118
      %p130 = scmp.eq.s32.totalorder %s24, 1
      %p131 = por %p129, %p130
      %p133 = scmp.ne.s32.totalorder %s118, %s132
      %p134 = scmp.eq.s32.totalorder %s24, 0
      %p135 = por %p133, %p134
      %s137 = sadd.s32 %s136, 1
      %p140 = scmp.eq.s32.totalorder %s18, 1
      %p141 = scmp.ne.s32.totalorder %s136, %s138
      %p142 = scmp.eq.s32.totalorder %s18, 0
      %p143 = por %p141, %p142
      %p144 = scmp.ne.s32.totalorder %s136, %s138
      %p145 = scmp.eq.s32.totalorder %s23, 1
      %p146 = por %p144, %p145
      %p147 = scmp.ne.s32.totalorder %s138, %s139
      %p148 = scmp.eq.s32.totalorder %s23, 0
      %p149 = por %p147, %p148
      %p150 = scmp.ne.s32.totalorder %s138, %s139
      %p151 = scmp.eq.s32.totalorder %s24, 1
      %p152 = por %p150, %p151
      %p154 = scmp.ne.s32.totalorder %s139, %s153
      %p155 = scmp.eq.s32.totalorder %s24, 0
      %p156 = por %p154, %p155
      %s158 = sadd.s32 %s157, 1
      %p161 = scmp.eq.s32.totalorder %s18, 1
      %p162 = scmp.ne.s32.totalorder %s157, %s159
      %p163 = scmp.eq.s32.totalorder %s18, 0
      %p164 = por %p162, %p163
      %p165 = scmp.ne.s32.totalorder %s157, %s159
      %p166 = scmp.eq.s32.totalorder %s23, 1
      %p167 = por %p165, %p166
      %p168 = scmp.ne.s32.totalorder %s159, %s160
      %p169 = scmp.eq.s32.totalorder %s23, 0
      %p170 = por %p168, %p169
      %p171 = scmp.ne.s32.totalorder %s159, %s160
      %p172 = scmp.eq.s32.totalorder %s24, 1
      %p173 = por %p171, %p172
      %p175 = scmp.ne.s32.totalorder %s160, %s174
      %p176 = scmp.eq.s32.totalorder %s24, 0
      %p177 = por %p175, %p176
      %s178 = ssub.s32 %s18, %s25
      %p179 = scmp.eq.s32.totalorder %s178, 0
      %s181 = sadd.s32 %s180, 1
      %s182 = scalar_select %p179, %s180, %s181
      %p185 = pneg %p179
      %p186 = scmp.eq.s32.totalorder %s18, 1
      %p187 = por %p185, %p186
      %p188 = scmp.ne.s32.totalorder %s180, %s183
      %p189 = scmp.eq.s32.totalorder %s18, 0
      %p190 = por %p188, %p189
      %p191 = scmp.ne.s32.totalorder %s180, %s183
      %p192 = scmp.eq.s32.totalorder %s23, 1
      %p193 = por %p191, %p192
      %p194 = scmp.ne.s32.totalorder %s183, %s184
      %p195 = scmp.eq.s32.totalorder %s23, 0
      %p196 = por %p194, %p195
      %p197 = scmp.ne.s32.totalorder %s183, %s184
      %p198 = scmp.eq.s32.totalorder %s24, 1
      %p199 = por %p197, %p198
      %p201 = scmp.ne.s32.totalorder %s184, %s200
      %p202 = scmp.eq.s32.totalorder %s24, 0
      %p203 = por %p201, %p202
      %p204 = scmp.le.s32.totalorder 1, %s18
      %p205 = scmp.lt.s32.totalorder %s18, 3
      %p206 = pnand %p204, %p205
      %p207 = pneg %p206
      // Predicated region
      $region9: #{tpu_custom_call.1} parent=5 // pred_check
        _
      $region10: #{tpu_custom_call.1} parent=5 // pred_check_branch
        %209 = sbr.rel (%p206) target = $region12
      $region11: #{tpu_custom_call.1} parent=5 // pred_region
        %s210 = ssub.s32 %s18, 1
        // Predicated region
        $region13: #{tpu_custom_call.1} parent=11 // pred_check
          %p211 = pneg %p65
        $region14: #{tpu_custom_call.1} parent=11 // pred_check_branch
          %213 = sbr.rel (%p211) target = $region16
        $region15: #{tpu_custom_call.1} parent=11 // pred_region
          %s215 = ssub.s32 512, 512
          %216 = vsyncadd [#allocation3], %s215
          %s217 = sshll.u32 [#allocation2], 4
          %s218 = int_to_ptr.vmem [resolvable:$true] %s217
          %223 = dma.hbm_to_vmem [thread:$0]  %s1, 512, %s218, [#allocation3], 128, 128, 8
        $region16: #{tpu_custom_call.1} parent=11 // pred_fallthru
          _
        // Predicated region
        $region17: #{tpu_custom_call.1} parent=11 // pred_check
          %p224 = pneg %p86
        $region18: #{tpu_custom_call.1} parent=11 // pred_check_branch
          %226 = sbr.rel (%p224) target = $region20
        $region19: #{tpu_custom_call.1} parent=11 // pred_region
          _
        $region20: #{tpu_custom_call.1} parent=11 // pred_fallthru
          _
        // Predicated region
        $region21: #{tpu_custom_call.1} parent=11 // pred_check
          %p227 = pneg %p107
        $region22: #{tpu_custom_call.1} parent=11 // pred_check_branch
          %229 = sbr.rel (%p227) target = $region24
        $region23: #{tpu_custom_call.1} parent=11 // pred_region
          _
        $region24: #{tpu_custom_call.1} parent=11 // pred_fallthru
          _
        // Predicated region
        $region25: #{tpu_custom_call.1} parent=11 // pred_check
          %p230 = pneg %p128
        $region26: #{tpu_custom_call.1} parent=11 // pred_check_branch
          %232 = sbr.rel (%p230) target = $region28
        $region27: #{tpu_custom_call.1} parent=11 // pred_region
          _
        $region28: #{tpu_custom_call.1} parent=11 // pred_fallthru
          _
        // Predicated region
        $region29: #{tpu_custom_call.1} parent=11 // pred_check
          %p233 = pneg %p149
        $region30: #{tpu_custom_call.1} parent=11 // pred_check_branch
          %235 = sbr.rel (%p233) target = $region32
        $region31: #{tpu_custom_call.1} parent=11 // pred_region
          %s237 = ssub.s32 1024, 1024
          %238 = vsyncadd [#allocation6], %s237
          %s239 = sshll.u32 [#allocation5], 4
          %s240 = int_to_ptr.vmem [resolvable:$true] %s239
          %245 = dma.hbm_to_vmem [thread:$0]  %s5, 1024, %s240, [#allocation6], 128, 128, 8
        $region32: #{tpu_custom_call.1} parent=11 // pred_fallthru
          _
        // Predicated region
        $region33: #{tpu_custom_call.1} parent=11 // pred_check
          %p246 = pneg %p170
        $region34: #{tpu_custom_call.1} parent=11 // pred_check_branch
          %248 = sbr.rel (%p246) target = $region36
        $region35: #{tpu_custom_call.1} parent=11 // pred_region
          _
        $region36: #{tpu_custom_call.1} parent=11 // pred_fallthru
          _
      $region12: #{tpu_custom_call.1} parent=5 // pred_fallthru
        _
      %p249 = scmp.lt.s32.totalorder %s18, 2
      // Predicated region
      $region37: #{tpu_custom_call.1} parent=5 // pred_check
        %p250 = pneg %p249
      $region38: #{tpu_custom_call.1} parent=5 // pred_check_branch
        %252 = sbr.rel (%p250) target = $region40
      $region39: #{tpu_custom_call.1} parent=5 // pred_region
        // Predicated region
        $region41: #{tpu_custom_call.1} parent=39 // pred_check
          %p253 = pneg %p38
        $region42: #{tpu_custom_call.1} parent=39 // pred_check_branch
          %255 = sbr.rel (%p253) target = $region44
        $region43: #{tpu_custom_call.1} parent=39 // pred_region
          %s256 = smul.u32 8, %s18
          %p257 = scmp.lt.s32.totalorder %s256, 15
          %s258 = scalar_select %p257, %s256, 15
          %s259 = smul.addr %s258, 2
          %s260 = smul.addr %s259, 8
          %s261 = scalar_lea.vmem %s0, %s260
          %s262 = smul.u32 8, %s18
        $region44: #{tpu_custom_call.1} parent=39 // pred_fallthru
          _
      $region40: #{tpu_custom_call.1} parent=5 // pred_fallthru
        _
      %p263 = scmp.le.s32.totalorder 1, %s18
      %p264 = scmp.lt.s32.totalorder %s18, 3
      %p265 = pnand %p263, %p264
      %p266 = pneg %p265
      // Predicated region
      $region45: #{tpu_custom_call.1} parent=5 // pred_check
        _
      $region46: #{tpu_custom_call.1} parent=5 // pred_check_branch
        %268 = sbr.rel (%p265) target = $region48
      $region47: #{tpu_custom_call.1} parent=5 // pred_region
        %s269 = ssub.s32 %s18, 1
        // Predicated region
        $region49: #{tpu_custom_call.1} parent=47 // pred_check
          %p270 = pneg %p65
        $region50: #{tpu_custom_call.1} parent=47 // pred_check_branch
          %272 = sbr.rel (%p270) target = $region52
        $region51: #{tpu_custom_call.1} parent=47 // pred_region
          %273 = dma.done [#allocation3], 512
        $region52: #{tpu_custom_call.1} parent=47 // pred_fallthru
          _
        // Predicated region
        $region53: #{tpu_custom_call.1} parent=47 // pred_check
          %p274 = pneg %p149
        $region54: #{tpu_custom_call.1} parent=47 // pred_check_branch
          %276 = sbr.rel (%p274) target = $region56
        $region55: #{tpu_custom_call.1} parent=47 // pred_region
          %277 = dma.done [#allocation6], 1024
        $region56: #{tpu_custom_call.1} parent=47 // pred_fallthru
          _
        %s278 = smul.u32 8, %s23
        %p279 = scmp.lt.s32.totalorder %s278, 15
        %s280 = scalar_select %p279, %s278, 15
        %s281 = smul.addr %s280, 2
        %s282 = smul.addr %s281, 8
        %s283 = scalar_lea.vmem %s0, %s282
        %p284 = pneg %p44
        %p285 = pneg %p41
        %p286 = pneg %p65
        %p287 = pneg %p62
        %p288 = pneg %p86
        %p289 = pneg %p83
        %p290 = pneg %p107
        %p291 = pneg %p104
        %p292 = pneg %p128
        %p293 = pneg %p125
        %p294 = pneg %p149
        %p295 = pneg %p146
        %p296 = pneg %p170
        %p297 = pneg %p167
        %p298 = pneg %p196
        %p299 = pneg %p193
        %s300 = sand.u32 %s183, 1
        %s301 = scalar_lea.sflag [#allocation4], %s300
        %s302 = sand.u32 %s183, 1
        %s303 = smul.addr %s302, 128
        %s304 = scalar_lea.vmem [#allocation7], %s303
        %s305 = smul.u32 8, %s23
        %p306 = scmp.lt.s32.totalorder %s305, 15
        %s307 = scalar_select %p306, %s305, 15
        %s308 = smul.addr %s307, 2
        %s309 = smul.addr %s308, 8
        %s310 = scalar_lea.vmem %s0, %s309
        %s311 = smul.u32 8, %s23
        %s312 = smul.u32 8, %s23
        %v313 = vld [vmem:[%s310] sm:$0xff]
        %v314 = vld [vmem:[%s310 + $0x8] sm:$0xff]
        %v315 = vld [vmem:[%s310 + $0x10] sm:$0xff]
        %v316 = vld [vmem:[%s310 + $0x18] sm:$0xff]
        %v317 = vld [vmem:[%s310 + $0x20] sm:$0xff]
        %v318 = vld [vmem:[%s310 + $0x28] sm:$0xff]
        %v319 = vld [vmem:[%s310 + $0x30] sm:$0xff]
        %v320 = vld [vmem:[%s310 + $0x38] sm:$0xff]
        %v321 = vld [vmem:[%s310 + $0x40] sm:$0xff]
        %v322 = vld [vmem:[%s310 + $0x48] sm:$0xff]
        %v323 = vld [vmem:[%s310 + $0x50] sm:$0xff]
        %v324 = vld [vmem:[%s310 + $0x58] sm:$0xff]
        %v325 = vld [vmem:[%s310 + $0x60] sm:$0xff]
        %v326 = vld [vmem:[%s310 + $0x68] sm:$0xff]
        %v327 = vld [vmem:[%s310 + $0x70] sm:$0xff]
        %v328 = vld [vmem:[%s310 + $0x78] sm:$0xff]
        %v329 = vld [vmem:[#allocation2] sm:$0xff]
        %v330 = vld [vmem:[#allocation2 + $0x8] sm:$0xff]
        %v331 = vld [vmem:[#allocation2 + $0x10] sm:$0xff]
        %v332 = vld [vmem:[#allocation2 + $0x18] sm:$0xff]
        %vm333 = vcmask 261120
        %v335 = vsel %vm333, %v313, 0
        %v338 = vsel %vm333, %v314, 0
        %v341 = vsel %vm333, %v315, 0
        %v344 = vsel %vm333, %v316, 0
        %v347 = vsel %vm333, %v317, 0
        %v350 = vsel %vm333, %v318, 0
        %v353 = vsel %vm333, %v319, 0
        %v356 = vsel %vm333, %v320, 0
        %v359 = vsel %vm333, %v321, 0
        %v362 = vsel %vm333, %v322, 0
        %v365 = vsel %vm333, %v323, 0
        %v368 = vsel %vm333, %v324, 0
        %v371 = vsel %vm333, %v325, 0
        %v374 = vsel %vm333, %v326, 0
        %v377 = vsel %vm333, %v327, 0
        %v380 = vsel %vm333, %v328, 0
        %382 = vmatprep.subr.mxu0 0.0
        %383 = vmatpush1.msra.mxu0 %v329
        %384 = vmatprep.subr.mxu0 0.0
        %385 = vmatpush1.msra.mxu0 %v330
        %386 = vmatprep.subr.mxu0 0.0
        %387 = vmatpush1.msra.mxu0 %v331
        %388 = vmatprep.subr.mxu0 0.0
        %389 = vmatpush1.msra.mxu0 %v332
        %390 = vmatprep.subr.mxu0 0.0
        %391 = vmatpush1.msra.mxu0 0.0
        %392 = vmatprep.subr.mxu0 0.0
        %393 = vmatpush1.msra.mxu0 0.0
        %394 = vmatprep.subr.mxu0 0.0
        %395 = vmatpush1.msra.mxu0 0.0
        %396 = vmatprep.subr.mxu0 0.0
        %397 = vmatpush1.msra.mxu0 0.0
        %398 = vmatprep.subr.mxu0 0.0
        %399 = vmatpush1.msra.mxu0 0.0
        %400 = vmatprep.subr.mxu0 0.0
        %401 = vmatpush1.msra.mxu0 0.0
        %402 = vmatprep.subr.mxu0 0.0
        %403 = vmatpush1.msra.mxu0 0.0
        %404 = vmatprep.subr.mxu0 0.0
        %405 = vmatpush1.msra.mxu0 0.0
        %406 = vmatprep.subr.mxu0 0.0
        %407 = vmatpush1.msra.mxu0 0.0
        %408 = vmatprep.subr.mxu0 0.0
        %409 = vmatpush1.msra.mxu0 0.0
        %410 = vmatprep.subr.mxu0 0.0
        %411 = vmatpush1.msra.mxu0 0.0
        %412 = vmatprep.subr.mxu0 0.0
        %413 = vmatpush1.msra.mxu0 0.0
        %414 = vmatprep.subr.mxu0 0.0
        %415 = vmatpush1.msra.mxu0 0.0
        %416 = vmatprep.subr.mxu0 0.0
        %417 = vmatpush1.msra.mxu0 0.0
        %418 = vmatprep.subr.mxu0 0.0
        %419 = vmatpush1.msra.mxu0 0.0
        %420 = vmatprep.subr.mxu0 0.0
        %421 = vmatpush1.msra.mxu0 0.0
        %422 = vmatprep.subr.mxu0 0.0
        %423 = vmatpush1.msra.mxu0 0.0
        %424 = vmatprep.subr.mxu0 0.0
        %425 = vmatpush1.msra.mxu0 0.0
        %426 = vmatprep.subr.mxu0 0.0
        %427 = vmatpush1.msra.mxu0 0.0
        %428 = vmatprep.subr.mxu0 0.0
        %429 = vmatpush1.msra.mxu0 0.0
        %430 = vmatprep.subr.mxu0 0.0
        %431 = vmatpush1.msra.mxu0 0.0
        %432 = vmatprep.subr.mxu0 0.0
        %433 = vmatpush1.msra.mxu0 0.0
        %434 = vmatprep.subr.mxu0 0.0
        %435 = vmatpush1.msra.mxu0 0.0
        %436 = vmatprep.subr.mxu0 0.0
        %437 = vmatpush1.msra.mxu0 0.0
        %438 = vmatprep.subr.mxu0 0.0
        %439 = vmatpush1.msra.mxu0 0.0
        %440 = vmatprep.subr.mxu0 0.0
        %441 = vmatpush1.msra.mxu0 0.0
        %442 = vmatprep.subr.mxu0 0.0
        %443 = vmatpush1.msra.mxu0 0.0
        %444 = vmatprep.subr.mxu0 0.0
        %445 = vmatpush1.msra.mxu0 0.0
        %446 = vmatprep.mubr.f32.mxu0 0.0
        %447 = vmatmul.mubr.f32.gmra.mrb[0].mxu0 %v335
        %v448 = vpop.f32.mrb[0].mxu0
        %v449 = vadd.f32 0.0, %v448
        %v450 = vpop.f32.mrb[0].mxu0
        %451 = vmatprep.mubr.f32.mxu0 0.0
        %452 = vmatmul.mubr.f32.gmra.mrb[0].mxu0 %v338
        %v453 = vpop.f32.mrb[0].mxu0
        %v454 = vadd.f32 0.0, %v453
        %v455 = vpop.f32.mrb[0].mxu0
        %456 = vmatprep.mubr.f32.mxu0 0.0
        %457 = vmatmul.mubr.f32.gmra.mrb[0].mxu0 %v341
        %v458 = vpop.f32.mrb[0].mxu0
        %v459 = vadd.f32 0.0, %v458
        %v460 = vpop.f32.mrb[0].mxu0
        %461 = vmatprep.mubr.f32.mxu0 0.0
        %462 = vmatmul.mubr.f32.gmra.mrb[0].mxu0 %v344
        %v463 = vpop.f32.mrb[0].mxu0
        %v464 = vadd.f32 0.0, %v463
        %v465 = vpop.f32.mrb[0].mxu0
        %466 = vmatprep.mubr.f32.mxu0 0.0
        %467 = vmatmul.mubr.f32.gmra.mrb[0].mxu0 %v347
        %v468 = vpop.f32.mrb[0].mxu0
        %v469 = vadd.f32 0.0, %v468
        %v470 = vpop.f32.mrb[0].mxu0
        %471 = vmatprep.mubr.f32.mxu0 0.0
        %472 = vmatmul.mubr.f32.gmra.mrb[0].mxu0 %v350
        %v473 = vpop.f32.mrb[0].mxu0
        %v474 = vadd.f32 0.0, %v473
        %v475 = vpop.f32.mrb[0].mxu0
        %476 = vmatprep.mubr.f32.mxu0 0.0
        %477 = vmatmul.mubr.f32.gmra.mrb[0].mxu0 %v353
        %v478 = vpop.f32.mrb[0].mxu0
        %v479 = vadd.f32 0.0, %v478
        %v480 = vpop.f32.mrb[0].mxu0
        %481 = vmatprep.mubr.f32.mxu0 0.0
        %482 = vmatmul.mubr.f32.gmra.mrb[0].mxu0 %v356
        %v483 = vpop.f32.mrb[0].mxu0
        %v484 = vadd.f32 0.0, %v483
        %v485 = vpop.f32.mrb[0].mxu0
        %486 = vmatprep.mubr.f32.mxu0 0.0
        %487 = vmatmul.mubr.f32.gmra.mrb[0].mxu0 %v359
        %v488 = vpop.f32.mrb[0].mxu0
        %v489 = vadd.f32 0.0, %v488
        %v490 = vpop.f32.mrb[0].mxu0
        %491 = vmatprep.mubr.f32.mxu0 0.0
        %492 = vmatmul.mubr.f32.gmra.mrb[0].mxu0 %v362
        %v493 = vpop.f32.mrb[0].mxu0
        %v494 = vadd.f32 0.0, %v493
        %v495 = vpop.f32.mrb[0].mxu0
        %496 = vmatprep.mubr.f32.mxu0 0.0
        %497 = vmatmul.mubr.f32.gmra.mrb[0].mxu0 %v365
        %v498 = vpop.f32.mrb[0].mxu0
        %v499 = vadd.f32 0.0, %v498
        %v500 = vpop.f32.mrb[0].mxu0
        %501 = vmatprep.mubr.f32.mxu0 0.0
        %502 = vmatmul.mubr.f32.gmra.mrb[0].mxu0 %v368
        %v503 = vpop.f32.mrb[0].mxu0
        %v504 = vadd.f32 0.0, %v503
        %v505 = vpop.f32.mrb[0].mxu0
        %506 = vmatprep.mubr.f32.mxu0 0.0
        %507 = vmatmul.mubr.f32.gmra.mrb[0].mxu0 %v371
        %v508 = vpop.f32.mrb[0].mxu0
        %v509 = vadd.f32 0.0, %v508
        %v510 = vpop.f32.mrb[0].mxu0
        %511 = vmatprep.mubr.f32.mxu0 0.0
        %512 = vmatmul.mubr.f32.gmra.mrb[0].mxu0 %v374
        %v513 = vpop.f32.mrb[0].mxu0
        %v514 = vadd.f32 0.0, %v513
        %v515 = vpop.f32.mrb[0].mxu0
        %516 = vmatprep.mubr.f32.mxu0 0.0
        %517 = vmatmul.mubr.f32.gmra.mrb[0].mxu0 %v377
        %v518 = vpop.f32.mrb[0].mxu0
        %v519 = vadd.f32 0.0, %v518
        %v520 = vpop.f32.mrb[0].mxu0
        %521 = vmatprep.mubr.f32.mxu0 0.0
        %522 = vmatmul.mubr.f32.gmra.mrb[0].mxu0 %v380
        %v523 = vpop.f32.mrb[0].mxu0
        %v524 = vadd.f32 0.0, %v523
        %v525 = vpop.f32.mrb[0].mxu0
        %526 = vdwg.mxu0
        %v527 = vld [vmem:[%s2] sm:$0xff]
        %v528 = vld [vmem:[%s2 + $0x8] sm:$0xff]
        %v529 = vld [vmem:[%s2 + $0x10] sm:$0xff]
        %v530 = vld [vmem:[%s2 + $0x18] sm:$0xff]
        %v531 = vld [vmem:[%s2 + $0x20] sm:$0xff]
        %v532 = vld [vmem:[%s2 + $0x28] sm:$0xff]
        %v533 = vld [vmem:[%s2 + $0x30] sm:$0xff]
        %v534 = vld [vmem:[%s2 + $0x38] sm:$0xff]
        %v535 = vld [vmem:[%s2 + $0x40] sm:$0xff]
        %v536 = vld [vmem:[%s2 + $0x48] sm:$0xff]
        %v537 = vld [vmem:[%s2 + $0x50] sm:$0xff]
        %v538 = vld [vmem:[%s2 + $0x58] sm:$0xff]
        %v539 = vld [vmem:[%s2 + $0x60] sm:$0xff]
        %v540 = vld [vmem:[%s2 + $0x68] sm:$0xff]
        %v541 = vld [vmem:[%s2 + $0x70] sm:$0xff]
        %v542 = vld [vmem:[%s2 + $0x78] sm:$0xff]
        %559 = vrot.lane.b32.xlu0 %v449, 64
        %v560 = vpop.permute.xlu0 %559
        %561 = vrot.lane.b32.xlu0 %v454, 64
        %v562 = vpop.permute.xlu0 %561
        %563 = vrot.lane.b32.xlu0 %v459, 64
        %v564 = vpop.permute.xlu0 %563
        %565 = vrot.lane.b32.xlu0 %v464, 64
        %v566 = vpop.permute.xlu0 %565
        %567 = vrot.lane.b32.xlu0 %v469, 64
        %v568 = vpop.permute.xlu0 %567
        %569 = vrot.lane.b32.xlu0 %v474, 64
        %v570 = vpop.permute.xlu0 %569
        %571 = vrot.lane.b32.xlu0 %v479, 64
        %v572 = vpop.permute.xlu0 %571
        %573 = vrot.lane.b32.xlu0 %v484, 64
        %v574 = vpop.permute.xlu0 %573
        %575 = vrot.lane.b32.xlu0 %v489, 64
        %v576 = vpop.permute.xlu0 %575
        %577 = vrot.lane.b32.xlu0 %v494, 64
        %v578 = vpop.permute.xlu0 %577
        %579 = vrot.lane.b32.xlu0 %v499, 64
        %v580 = vpop.permute.xlu0 %579
        %581 = vrot.lane.b32.xlu0 %v504, 64
        %v582 = vpop.permute.xlu0 %581
        %583 = vrot.lane.b32.xlu0 %v509, 64
        %v584 = vpop.permute.xlu0 %583
        %585 = vrot.lane.b32.xlu0 %v514, 64
        %v586 = vpop.permute.xlu0 %585
        %587 = vrot.lane.b32.xlu0 %v519, 64
        %v588 = vpop.permute.xlu0 %587
        %589 = vrot.lane.b32.xlu0 %v524, 64
        %v590 = vpop.permute.xlu0 %589
        %v607 = vmul.f32 %v527, %v560
        %v608 = vmul.f32 %v528, %v562
        %v609 = vmul.f32 %v529, %v564
        %v610 = vmul.f32 %v530, %v566
        %v611 = vmul.f32 %v531, %v568
        %v612 = vmul.f32 %v532, %v570
        %v613 = vmul.f32 %v533, %v572
        %v614 = vmul.f32 %v534, %v574
        %v615 = vmul.f32 %v535, %v576
        %v616 = vmul.f32 %v536, %v578
        %v617 = vmul.f32 %v537, %v580
        %v618 = vmul.f32 %v538, %v582
        %v619 = vmul.f32 %v539, %v584
        %v620 = vmul.f32 %v540, %v586
        %v621 = vmul.f32 %v541, %v588
        %v622 = vmul.f32 %v542, %v590
        %v623 = vld [vmem:[%s4] sm:$0xff]
        %v624 = vld [vmem:[%s4 + $0x8] sm:$0xff]
        %v625 = vld [vmem:[%s4 + $0x10] sm:$0xff]
        %v626 = vld [vmem:[%s4 + $0x18] sm:$0xff]
        %v627 = vld [vmem:[%s4 + $0x20] sm:$0xff]
        %v628 = vld [vmem:[%s4 + $0x28] sm:$0xff]
        %v629 = vld [vmem:[%s4 + $0x30] sm:$0xff]
        %v630 = vld [vmem:[%s4 + $0x38] sm:$0xff]
        %v631 = vld [vmem:[%s4 + $0x40] sm:$0xff]
        %v632 = vld [vmem:[%s4 + $0x48] sm:$0xff]
        %v633 = vld [vmem:[%s4 + $0x50] sm:$0xff]
        %v634 = vld [vmem:[%s4 + $0x58] sm:$0xff]
        %v635 = vld [vmem:[%s4 + $0x60] sm:$0xff]
        %v636 = vld [vmem:[%s4 + $0x68] sm:$0xff]
        %v637 = vld [vmem:[%s4 + $0x70] sm:$0xff]
        %v638 = vld [vmem:[%s4 + $0x78] sm:$0xff]
        %639 = vmatprep.subr.mxu0 0.0
        %640 = vmatpush1.msra.mxu0 %v607
        %641 = vmatprep.subr.mxu0 0.0
        %642 = vmatpush1.msra.mxu0 %v608
        %643 = vmatprep.subr.mxu0 0.0
        %644 = vmatpush1.msra.mxu0 %v609
        %645 = vmatprep.subr.mxu0 0.0
        %646 = vmatpush1.msra.mxu0 %v610
        %647 = vmatprep.subr.mxu0 0.0
        %648 = vmatpush1.msra.mxu0 %v611
        %649 = vmatprep.subr.mxu0 0.0
        %650 = vmatpush1.msra.mxu0 %v612
        %651 = vmatprep.subr.mxu0 0.0
        %652 = vmatpush1.msra.mxu0 %v613
        %653 = vmatprep.subr.mxu0 0.0
        %654 = vmatpush1.msra.mxu0 %v614
        %655 = vmatprep.subr.mxu0 0.0
        %656 = vmatpush1.msra.mxu0 %v615
        %657 = vmatprep.subr.mxu0 0.0
        %658 = vmatpush1.msra.mxu0 %v616
        %659 = vmatprep.subr.mxu0 0.0
        %660 = vmatpush1.msra.mxu0 %v617
        %661 = vmatprep.subr.mxu0 0.0
        %662 = vmatpush1.msra.mxu0 %v618
        %663 = vmatprep.subr.mxu0 0.0
        %664 = vmatpush1.msra.mxu0 %v619
        %665 = vmatprep.subr.mxu0 0.0
        %666 = vmatpush1.msra.mxu0 %v620
        %667 = vmatprep.subr.mxu0 0.0
        %668 = vmatpush1.msra.mxu0 %v621
        %669 = vmatprep.subr.mxu0 0.0
        %670 = vmatpush1.msra.mxu0 %v622
        %671 = vmatprep.subr.mxu0 0.0
        %672 = vmatpush1.msra.mxu0 0.0
        %673 = vmatprep.subr.mxu0 0.0
        %674 = vmatpush1.msra.mxu0 0.0
        %675 = vmatprep.subr.mxu0 0.0
        %676 = vmatpush1.msra.mxu0 0.0
        %677 = vmatprep.subr.mxu0 0.0
        %678 = vmatpush1.msra.mxu0 0.0
        %679 = vmatprep.subr.mxu0 0.0
        %680 = vmatpush1.msra.mxu0 0.0
        %681 = vmatprep.subr.mxu0 0.0
        %682 = vmatpush1.msra.mxu0 0.0
        %683 = vmatprep.subr.mxu0 0.0
        %684 = vmatpush1.msra.mxu0 0.0
        %685 = vmatprep.subr.mxu0 0.0
        %686 = vmatpush1.msra.mxu0 0.0
        %687 = vmatprep.subr.mxu0 0.0
        %688 = vmatpush1.msra.mxu0 0.0
        %689 = vmatprep.subr.mxu0 0.0
        %690 = vmatpush1.msra.mxu0 0.0
        %691 = vmatprep.subr.mxu0 0.0
        %692 = vmatpush1.msra.mxu0 0.0
        %693 = vmatprep.subr.mxu0 0.0
        %694 = vmatpush1.msra.mxu0 0.0
        %695 = vmatprep.subr.mxu0 0.0
        %696 = vmatpush1.msra.mxu0 0.0
        %697 = vmatprep.subr.mxu0 0.0
        %698 = vmatpush1.msra.mxu0 0.0
        %699 = vmatprep.subr.mxu0 0.0
        %700 = vmatpush1.msra.mxu0 0.0
        %701 = vmatprep.subr.mxu0 0.0
        %702 = vmatpush1.msra.mxu0 0.0
        %703 = vmatprep.mubr.f32.mxu0 0.0
        %704 = vmatmul.mubr.f32.gmra.mrb[0].mxu0 %v623
        %v705 = vpop.f32.mrb[0].mxu0
        %v706 = vadd.f32 0.0, %v705
        %v707 = vpop.f32.mrb[0].mxu0
        %708 = vmatprep.mubr.f32.mxu0 0.0
        %709 = vmatmul.mubr.f32.gmra.mrb[0].mxu0 %v624
        %v710 = vpop.f32.mrb[0].mxu0
        %v711 = vadd.f32 0.0, %v710
        %v712 = vpop.f32.mrb[0].mxu0
        %713 = vmatprep.mubr.f32.mxu0 0.0
        %714 = vmatmul.mubr.f32.gmra.mrb[0].mxu0 %v625
        %v715 = vpop.f32.mrb[0].mxu0
        %v716 = vadd.f32 0.0, %v715
        %v717 = vpop.f32.mrb[0].mxu0
        %718 = vmatprep.mubr.f32.mxu0 0.0
        %719 = vmatmul.mubr.f32.gmra.mrb[0].mxu0 %v626
        %v720 = vpop.f32.mrb[0].mxu0
        %v721 = vadd.f32 0.0, %v720
        %v722 = vpop.f32.mrb[0].mxu0
        %723 = vmatprep.mubr.f32.mxu0 0.0
        %724 = vmatmul.mubr.f32.gmra.mrb[0].mxu0 %v627
        %v725 = vpop.f32.mrb[0].mxu0
        %v726 = vadd.f32 0.0, %v725
        %v727 = vpop.f32.mrb[0].mxu0
        %728 = vmatprep.mubr.f32.mxu0 0.0
        %729 = vmatmul.mubr.f32.gmra.mrb[0].mxu0 %v628
        %v730 = vpop.f32.mrb[0].mxu0
        %v731 = vadd.f32 0.0, %v730
        %v732 = vpop.f32.mrb[0].mxu0
        %733 = vmatprep.mubr.f32.mxu0 0.0
        %734 = vmatmul.mubr.f32.gmra.mrb[0].mxu0 %v629
        %v735 = vpop.f32.mrb[0].mxu0
        %v736 = vadd.f32 0.0, %v735
        %v737 = vpop.f32.mrb[0].mxu0
        %738 = vmatprep.mubr.f32.mxu0 0.0
        %739 = vmatmul.mubr.f32.gmra.mrb[0].mxu0 %v630
        %v740 = vpop.f32.mrb[0].mxu0
        %v741 = vadd.f32 0.0, %v740
        %v742 = vpop.f32.mrb[0].mxu0
        %743 = vmatprep.mubr.f32.mxu0 0.0
        %744 = vmatmul.mubr.f32.gmra.mrb[0].mxu0 %v631
        %v745 = vpop.f32.mrb[0].mxu0
        %v746 = vadd.f32 0.0, %v745
        %v747 = vpop.f32.mrb[0].mxu0
        %748 = vmatprep.mubr.f32.mxu0 0.0
        %749 = vmatmul.mubr.f32.gmra.mrb[0].mxu0 %v632
        %v750 = vpop.f32.mrb[0].mxu0
        %v751 = vadd.f32 0.0, %v750
        %v752 = vpop.f32.mrb[0].mxu0
        %753 = vmatprep.mubr.f32.mxu0 0.0
        %754 = vmatmul.mubr.f32.gmra.mrb[0].mxu0 %v633
        %v755 = vpop.f32.mrb[0].mxu0
        %v756 = vadd.f32 0.0, %v755
        %v757 = vpop.f32.mrb[0].mxu0
        %758 = vmatprep.mubr.f32.mxu0 0.0
        %759 = vmatmul.mubr.f32.gmra.mrb[0].mxu0 %v634
        %v760 = vpop.f32.mrb[0].mxu0
        %v761 = vadd.f32 0.0, %v760
        %v762 = vpop.f32.mrb[0].mxu0
        %763 = vmatprep.mubr.f32.mxu0 0.0
        %764 = vmatmul.mubr.f32.gmra.mrb[0].mxu0 %v635
        %v765 = vpop.f32.mrb[0].mxu0
        %v766 = vadd.f32 0.0, %v765
        %v767 = vpop.f32.mrb[0].mxu0
        %768 = vmatprep.mubr.f32.mxu0 0.0
        %769 = vmatmul.mubr.f32.gmra.mrb[0].mxu0 %v636
        %v770 = vpop.f32.mrb[0].mxu0
        %v771 = vadd.f32 0.0, %v770
        %v772 = vpop.f32.mrb[0].mxu0
        %773 = vmatprep.mubr.f32.mxu0 0.0
        %774 = vmatmul.mubr.f32.gmra.mrb[0].mxu0 %v637
        %v775 = vpop.f32.mrb[0].mxu0
        %v776 = vadd.f32 0.0, %v775
        %v777 = vpop.f32.mrb[0].mxu0
        %778 = vmatprep.mubr.f32.mxu0 0.0
        %779 = vmatmul.mubr.f32.gmra.mrb[0].mxu0 %v638
        %v780 = vpop.f32.mrb[0].mxu0
        %v781 = vadd.f32 0.0, %v780
        %v782 = vpop.f32.mrb[0].mxu0
        %783 = vdwg.mxu0
        %v784 = vld [vmem:[%s3] sm:$0xff]
        %v785 = vld [vmem:[%s3 + $0x8] sm:$0xff]
        %v786 = vld [vmem:[%s3 + $0x10] sm:$0xff]
        %v787 = vld [vmem:[%s3 + $0x18] sm:$0xff]
        %v788 = vld [vmem:[%s3 + $0x20] sm:$0xff]
        %v789 = vld [vmem:[%s3 + $0x28] sm:$0xff]
        %v790 = vld [vmem:[%s3 + $0x30] sm:$0xff]
        %v791 = vld [vmem:[%s3 + $0x38] sm:$0xff]
        %v792 = vld [vmem:[%s3 + $0x40] sm:$0xff]
        %v793 = vld [vmem:[%s3 + $0x48] sm:$0xff]
        %v794 = vld [vmem:[%s3 + $0x50] sm:$0xff]
        %v795 = vld [vmem:[%s3 + $0x58] sm:$0xff]
        %v796 = vld [vmem:[%s3 + $0x60] sm:$0xff]
        %v797 = vld [vmem:[%s3 + $0x68] sm:$0xff]
        %v798 = vld [vmem:[%s3 + $0x70] sm:$0xff]
        %v799 = vld [vmem:[%s3 + $0x78] sm:$0xff]
        %v800 = vmul.f32 %v784, %v449
        %v801 = vmul.f32 %v785, %v454
        %v802 = vmul.f32 %v786, %v459
        %v803 = vmul.f32 %v787, %v464
        %v804 = vmul.f32 %v788, %v469
        %v805 = vmul.f32 %v789, %v474
        %v806 = vmul.f32 %v790, %v479
        %v807 = vmul.f32 %v791, %v484
        %v808 = vmul.f32 %v792, %v489
        %v809 = vmul.f32 %v793, %v494
        %v810 = vmul.f32 %v794, %v499
        %v811 = vmul.f32 %v795, %v504
        %v812 = vmul.f32 %v796, %v509
        %v813 = vmul.f32 %v797, %v514
        %v814 = vmul.f32 %v798, %v519
        %v815 = vmul.f32 %v799, %v524
        %v816 = vadd.f32 %v800, %v706
        %v817 = vadd.f32 %v801, %v711
        %v818 = vadd.f32 %v802, %v716
        %v819 = vadd.f32 %v803, %v721
        %v820 = vadd.f32 %v804, %v726
        %v821 = vadd.f32 %v805, %v731
        %v822 = vadd.f32 %v806, %v736
        %v823 = vadd.f32 %v807, %v741
        %v824 = vadd.f32 %v808, %v746
        %v825 = vadd.f32 %v809, %v751
        %v826 = vadd.f32 %v810, %v756
        %v827 = vadd.f32 %v811, %v761
        %v828 = vadd.f32 %v812, %v766
        %v829 = vadd.f32 %v813, %v771
        %v830 = vadd.f32 %v814, %v776
        %v831 = vadd.f32 %v815, %v781
        %v832 = vld [vmem:[#allocation5] sm:$0xff]
        %v833 = vld [vmem:[#allocation5 + $0x8] sm:$0xff]
        %v834 = vld [vmem:[#allocation5 + $0x10] sm:$0xff]
        %v835 = vld [vmem:[#allocation5 + $0x18] sm:$0xff]
        %v836 = vld [vmem:[#allocation5 + $0x20] sm:$0xff]
        %v837 = vld [vmem:[#allocation5 + $0x28] sm:$0xff]
        %v838 = vld [vmem:[#allocation5 + $0x30] sm:$0xff]
        %v839 = vld [vmem:[#allocation5 + $0x38] sm:$0xff]
        %v840 = vld [vmem:[%s6] sm:$0x1]
        %v842 = vlaneseq
        %v843 = vshrl.u32 %v842, 7
        %v844 = vsub.s32 0, %v843
        %v845 = vrot.slane %v840, %v844
        %vm847 = vcmask 523264
        %v849 = vsel %vm847, %v816, 0
        %v852 = vsel %vm847, %v817, 0
        %v855 = vsel %vm847, %v818, 0
        %v858 = vsel %vm847, %v819, 0
        %v861 = vsel %vm847, %v820, 0
        %v864 = vsel %vm847, %v821, 0
        %v867 = vsel %vm847, %v822, 0
        %v870 = vsel %vm847, %v823, 0
        %v873 = vsel %vm847, %v824, 0
        %v876 = vsel %vm847, %v825, 0
        %v879 = vsel %vm847, %v826, 0
        %v882 = vsel %vm847, %v827, 0
        %v885 = vsel %vm847, %v828, 0
        %v888 = vsel %vm847, %v829, 0
        %v891 = vsel %vm847, %v830, 0
        %v894 = vsel %vm847, %v831, 0
        %896 = vmatprep.subr.mxu0 0.0
        %897 = vmatpush1.msra.mxu0 %v832
        %898 = vmatprep.subr.mxu0 0.0
        %899 = vmatpush1.msra.mxu0 %v833
        %900 = vmatprep.subr.mxu0 0.0
        %901 = vmatpush1.msra.mxu0 %v834
        %902 = vmatprep.subr.mxu0 0.0
        %903 = vmatpush1.msra.mxu0 %v835
        %904 = vmatprep.subr.mxu0 0.0
        %905 = vmatpush1.msra.mxu0 %v836
        %906 = vmatprep.subr.mxu0 0.0
        %907 = vmatpush1.msra.mxu0 %v837
        %908 = vmatprep.subr.mxu0 0.0
        %909 = vmatpush1.msra.mxu0 %v838
        %910 = vmatprep.subr.mxu0 0.0
        %911 = vmatpush1.msra.mxu0 %v839
        %912 = vmatprep.subr.mxu0 0.0
        %913 = vmatpush1.msra.mxu0 0.0
        %914 = vmatprep.subr.mxu0 0.0
        %915 = vmatpush1.msra.mxu0 0.0
        %916 = vmatprep.subr.mxu0 0.0
        %917 = vmatpush1.msra.mxu0 0.0
        %918 = vmatprep.subr.mxu0 0.0
        %919 = vmatpush1.msra.mxu0 0.0
        %920 = vmatprep.subr.mxu0 0.0
        %921 = vmatpush1.msra.mxu0 0.0
        %922 = vmatprep.subr.mxu0 0.0
        %923 = vmatpush1.msra.mxu0 0.0
        %924 = vmatprep.subr.mxu0 0.0
        %925 = vmatpush1.msra.mxu0 0.0
        %926 = vmatprep.subr.mxu0 0.0
        %927 = vmatpush1.msra.mxu0 0.0
        %928 = vmatprep.subr.mxu0 0.0
        %929 = vmatpush1.msra.mxu0 0.0
        %930 = vmatprep.subr.mxu0 0.0
        %931 = vmatpush1.msra.mxu0 0.0
        %932 = vmatprep.subr.mxu0 0.0
        %933 = vmatpush1.msra.mxu0 0.0
        %934 = vmatprep.subr.mxu0 0.0
        %935 = vmatpush1.msra.mxu0 0.0
        %936 = vmatprep.subr.mxu0 0.0
        %937 = vmatpush1.msra.mxu0 0.0
        %938 = vmatprep.subr.mxu0 0.0
        %939 = vmatpush1.msra.mxu0 0.0
        %940 = vmatprep.subr.mxu0 0.0
        %941 = vmatpush1.msra.mxu0 0.0
        %942 = vmatprep.subr.mxu0 0.0
        %943 = vmatpush1.msra.mxu0 0.0
        %944 = vmatprep.subr.mxu0 0.0
        %945 = vmatpush1.msra.mxu0 0.0
        %946 = vmatprep.subr.mxu0 0.0
        %947 = vmatpush1.msra.mxu0 0.0
        %948 = vmatprep.subr.mxu0 0.0
        %949 = vmatpush1.msra.mxu0 0.0
        %950 = vmatprep.subr.mxu0 0.0
        %951 = vmatpush1.msra.mxu0 0.0
        %952 = vmatprep.subr.mxu0 0.0
        %953 = vmatpush1.msra.mxu0 0.0
        %954 = vmatprep.subr.mxu0 0.0
        %955 = vmatpush1.msra.mxu0 0.0
        %956 = vmatprep.subr.mxu0 0.0
        %957 = vmatpush1.msra.mxu0 0.0
        %958 = vmatprep.subr.mxu0 0.0
        %959 = vmatpush1.msra.mxu0 0.0
        %960 = vmatprep.mubr.f32.mxu0 0.0
        %961 = vmatmul.mubr.f32.gmra.mrb[0].mxu0 %v849
        %v962 = vpop.f32.mrb[0].mxu0
        %v963 = vadd.f32 %v845, %v962
        %v964 = vpop.f32.mrb[0].mxu0
        %965 = vmatprep.mubr.f32.mxu0 0.0
        %966 = vmatmul.mubr.f32.gmra.mrb[0].mxu0 %v852
        %v967 = vpop.f32.mrb[0].mxu0
        %v968 = vadd.f32 %v845, %v967
        %v969 = vpop.f32.mrb[0].mxu0
        %970 = vmatprep.mubr.f32.mxu0 0.0
        %971 = vmatmul.mubr.f32.gmra.mrb[0].mxu0 %v855
        %v972 = vpop.f32.mrb[0].mxu0
        %v973 = vadd.f32 %v845, %v972
        %v974 = vpop.f32.mrb[0].mxu0
        %975 = vmatprep.mubr.f32.mxu0 0.0
        %976 = vmatmul.mubr.f32.gmra.mrb[0].mxu0 %v858
        %v977 = vpop.f32.mrb[0].mxu0
        %v978 = vadd.f32 %v845, %v977
        %v979 = vpop.f32.mrb[0].mxu0
        %980 = vmatprep.mubr.f32.mxu0 0.0
        %981 = vmatmul.mubr.f32.gmra.mrb[0].mxu0 %v861
        %v982 = vpop.f32.mrb[0].mxu0
        %v983 = vadd.f32 %v845, %v982
        %v984 = vpop.f32.mrb[0].mxu0
        %985 = vmatprep.mubr.f32.mxu0 0.0
        %986 = vmatmul.mubr.f32.gmra.mrb[0].mxu0 %v864
        %v987 = vpop.f32.mrb[0].mxu0
        %v988 = vadd.f32 %v845, %v987
        %v989 = vpop.f32.mrb[0].mxu0
        %990 = vmatprep.mubr.f32.mxu0 0.0
        %991 = vmatmul.mubr.f32.gmra.mrb[0].mxu0 %v867
        %v992 = vpop.f32.mrb[0].mxu0
        %v993 = vadd.f32 %v845, %v992
        %v994 = vpop.f32.mrb[0].mxu0
        %995 = vmatprep.mubr.f32.mxu0 0.0
        %996 = vmatmul.mubr.f32.gmra.mrb[0].mxu0 %v870
        %v997 = vpop.f32.mrb[0].mxu0
        %v998 = vadd.f32 %v845, %v997
        %v999 = vpop.f32.mrb[0].mxu0
        %1000 = vmatprep.mubr.f32.mxu0 0.0
        %1001 = vmatmul.mubr.f32.gmra.mrb[0].mxu0 %v873
        %v1002 = vpop.f32.mrb[0].mxu0
        %v1003 = vadd.f32 %v845, %v1002
        %v1004 = vpop.f32.mrb[0].mxu0
        %1005 = vmatprep.mubr.f32.mxu0 0.0
        %1006 = vmatmul.mubr.f32.gmra.mrb[0].mxu0 %v876
        %v1007 = vpop.f32.mrb[0].mxu0
        %v1008 = vadd.f32 %v845, %v1007
        %v1009 = vpop.f32.mrb[0].mxu0
        %1010 = vmatprep.mubr.f32.mxu0 0.0
        %1011 = vmatmul.mubr.f32.gmra.mrb[0].mxu0 %v879
        %v1012 = vpop.f32.mrb[0].mxu0
        %v1013 = vadd.f32 %v845, %v1012
        %v1014 = vpop.f32.mrb[0].mxu0
        %1015 = vmatprep.mubr.f32.mxu0 0.0
        %1016 = vmatmul.mubr.f32.gmra.mrb[0].mxu0 %v882
        %v1017 = vpop.f32.mrb[0].mxu0
        %v1018 = vadd.f32 %v845, %v1017
        %v1019 = vpop.f32.mrb[0].mxu0
        %1020 = vmatprep.mubr.f32.mxu0 0.0
        %1021 = vmatmul.mubr.f32.gmra.mrb[0].mxu0 %v885
        %v1022 = vpop.f32.mrb[0].mxu0
        %v1023 = vadd.f32 %v845, %v1022
        %v1024 = vpop.f32.mrb[0].mxu0
        %1025 = vmatprep.mubr.f32.mxu0 0.0
        %1026 = vmatmul.mubr.f32.gmra.mrb[0].mxu0 %v888
        %v1027 = vpop.f32.mrb[0].mxu0
        %v1028 = vadd.f32 %v845, %v1027
        %v1029 = vpop.f32.mrb[0].mxu0
        %1030 = vmatprep.mubr.f32.mxu0 0.0
        %1031 = vmatmul.mubr.f32.gmra.mrb[0].mxu0 %v891
        %v1032 = vpop.f32.mrb[0].mxu0
        %v1033 = vadd.f32 %v845, %v1032
        %v1034 = vpop.f32.mrb[0].mxu0
        %1035 = vmatprep.mubr.f32.mxu0 0.0
        %1036 = vmatmul.mubr.f32.gmra.mrb[0].mxu0 %v894
        %v1037 = vpop.f32.mrb[0].mxu0
        %v1038 = vadd.f32 %v845, %v1037
        %v1039 = vpop.f32.mrb[0].mxu0
        %1040 = vdwg.mxu0
        %1041 = vst.msk [vmem:[%s304] sm:$0xff] %vm847, %v963
        %1042 = vst.msk [vmem:[%s304 + $0x8] sm:$0xff] %vm847, %v968
        %1043 = vst.msk [vmem:[%s304 + $0x10] sm:$0xff] %vm847, %v973
        %1044 = vst.msk [vmem:[%s304 + $0x18] sm:$0xff] %vm847, %v978
        %1045 = vst.msk [vmem:[%s304 + $0x20] sm:$0xff] %vm847, %v983
        %1046 = vst.msk [vmem:[%s304 + $0x28] sm:$0xff] %vm847, %v988
        %1047 = vst.msk [vmem:[%s304 + $0x30] sm:$0xff] %vm847, %v993
        %1048 = vst.msk [vmem:[%s304 + $0x38] sm:$0xff] %vm847, %v998
        %1049 = vst.msk [vmem:[%s304 + $0x40] sm:$0xff] %vm847, %v1003
        %1050 = vst.msk [vmem:[%s304 + $0x48] sm:$0xff] %vm847, %v1008
        %1051 = vst.msk [vmem:[%s304 + $0x50] sm:$0xff] %vm847, %v1013
        %1052 = vst.msk [vmem:[%s304 + $0x58] sm:$0xff] %vm847, %v1018
        %1053 = vst.msk [vmem:[%s304 + $0x60] sm:$0xff] %vm847, %v1023
        %1054 = vst.msk [vmem:[%s304 + $0x68] sm:$0xff] %vm847, %v1028
        %1055 = vst.msk [vmem:[%s304 + $0x70] sm:$0xff] %vm847, %v1033
        %1056 = vst.msk [vmem:[%s304 + $0x78] sm:$0xff] %vm847, %v1038
        %s1057 = sand.u32 %s183, 1
        %s1058 = scalar_lea.sflag [#allocation4], %s1057
        %s1059 = sand.u32 %s183, 1
        %s1060 = smul.addr %s1059, 128
        %s1061 = scalar_lea.vmem [#allocation7], %s1060
        // Predicated region
        $region57: #{tpu_custom_call.1} parent=47 // pred_check
          %p1062 = pneg %p193
        $region58: #{tpu_custom_call.1} parent=47 // pred_check_branch
          %1064 = sbr.rel (%p1062) target = $region60
        $region59: #{tpu_custom_call.1} parent=47 // pred_region
          %s1065 = smul.u32 8, %s23
          %s1067 = ssub.s32 2048, 2048
          %1068 = vsyncadd %s1058, %s1067
          %s1069 = smul.addr %s1065, 2
          %s1070 = smul.addr %s1069, 128
          %s1071 = scalar_lea.hbm %s7, %s1070
          %s1072 = sshll.u32 %s1061, 4
          %s1073 = int_to_ptr.vmem [resolvable:$true] %s1072
          %1078 = dma.vmem_to_hbm [thread:$0]  %s1073, 2048, %s1071, %s1058, 128, 128, 8
        $region60: #{tpu_custom_call.1} parent=47 // pred_fallthru
          _
      $region48: #{tpu_custom_call.1} parent=5 // pred_fallthru
        _
      %p1079 = scmp.le.s32.totalorder 2, %s18
      // Predicated region
      $region61: #{tpu_custom_call.1} parent=5 // pred_check
        %p1080 = pneg %p1079
      $region62: #{tpu_custom_call.1} parent=5 // pred_check_branch
        %1082 = sbr.rel (%p1080) target = $region64
      $region63: #{tpu_custom_call.1} parent=5 // pred_region
        %s1083 = ssub.s32 %s18, 2
        // Predicated region
        $region65: #{tpu_custom_call.1} parent=63 // pred_check
          %p1084 = pneg %p199
        $region66: #{tpu_custom_call.1} parent=63 // pred_check_branch
          %1086 = sbr.rel (%p1084) target = $region68
        $region67: #{tpu_custom_call.1} parent=63 // pred_region
          %s1087 = sand.u32 %s184, 1
          %s1088 = scalar_lea.sflag [#allocation4], %s1087
          %s1089 = sand.u32 %s184, 1
          %s1090 = smul.addr %s1089, 128
          %s1091 = scalar_lea.vmem [#allocation7], %s1090
          %1092 = dma.done %s1088, 2048
        $region68: #{tpu_custom_call.1} parent=63 // pred_fallthru
          _
      $region64: #{tpu_custom_call.1} parent=5 // pred_fallthru
        _
    $region6: #{tpu_custom_call.1} parent=1 // loop_footer
      %s22 = sadd.s32 1, %s18
    $region7: #{tpu_custom_call.1} parent=1 // loop_footer_branch
      %17 = sbr.rel target = $region3
    $region8: #{tpu_custom_call.1} parent=1 // loop_exit
      _
    %1093 = vsyncpa [#allocation3], 1
    %s1094 = scalar_lea.sflag [#allocation3], 1
    %1095 = vsyncpa %s1094, 1
    %1096 = vsyncpa [#allocation6], 1
    %1097 = vsyncpa [#allocation4], 1
    %s1098 = scalar_lea.sflag [#allocation4], 1
    %1099 = vsyncpa %s1098, 1

</llo_original>
